<compile_context>
chip_gen: v7x
topology: tpu7x:2x2x1
jax: 0.10.0
libtpu: 0.0.40
codegen_flags: <defaults>
</compile_context>

<pallas_src>
import jax
import jax.numpy as jnp
from jax.experimental import pallas as pl
from jax.experimental.pallas import tpu as pltpu

TWOPI = 2.0 * 3.14159265359

# Cephes single-precision minimax coefficients, valid on [-pi/4, pi/4].
_SIN_C1 = -1.6666654611e-1
_SIN_C2 = 8.3321608736e-3
_SIN_C3 = -1.9515295891e-4
_COS_C1 = 4.166664568298827e-2
_COS_C2 = -1.388731625493765e-3
_COS_C3 = 2.443315711809948e-5


def _fourier_kernel(x_ref, b_ref, o_ref):
    # x_ref: (tile_b, C), b_ref: (C, M) UNSCALED, o_ref: (tile_b, 2*M)
    m = b_ref.shape[-1]

    # MXU projection (K = channels is tiny; MXU slot is otherwise idle).
    y = jnp.dot(x_ref[...], b_ref[...], preferred_element_type=jnp.float32)

    # sin(2*pi*y), cos(2*pi*y) via a shared, trivialized range reduction:
    #   period-1 reduction:  r = y - round(y),  r in [-0.5, 0.5]
    #   octant reduction:    2*pi*r = theta + k*(pi/2),  theta in [-pi/4, pi/4]
    r = y - jnp.round(y)
    kf = jnp.round(4.0 * r)            # kf in {-2, -1, 0, 1, 2}
    t = r - 0.25 * kf                  # t in [-1/8, 1/8]
    theta = TWOPI * t                  # theta in [-pi/4, pi/4]
    z = theta * theta

    # Shared polynomial pair on the reduced argument.
    sin_p = ((_SIN_C3 * z + _SIN_C2) * z + _SIN_C1) * z * theta + theta
    cos_p = ((_COS_C3 * z + _COS_C2) * z + _COS_C1) * z * z - 0.5 * z + 1.0

    # Quadrant selection (k & 3 handles negative k in two's complement).
    k = kf.astype(jnp.int32) & 3
    swap = (k & 1) == 1
    sin_v = jnp.where(swap, cos_p, sin_p)
    cos_v = jnp.where(swap, sin_p, cos_p)
    sin_v = jnp.where(k >= 2, -sin_v, sin_v)
    cos_v = jnp.where((k == 1) | (k == 2), -cos_v, cos_v)

    # Two direct half-writes (lane-dense when m % 128 == 0).
    o_ref[:, :m] = sin_v.astype(o_ref.dtype)
    o_ref[:, m:] = cos_v.astype(o_ref.dtype)


def fourier_feature_transform(x, B_mat, *, tile_b=None, out_dtype=jnp.float32):
    """x: [batches, channels] f32; B_mat: [channels, mapping_size] f32.

    Returns [batches, 2 * mapping_size] = cat(sin(2pi*x@B), cos(2pi*x@B), -1).
    Pass out_dtype=jnp.bfloat16 as a fast path on v5e/v6e when downstream
    tolerates bf16 (halves HBM writeback); default f32 matches the reference.
    """
    batches, channels = x.shape
    c2, mapping_size = B_mat.shape
    assert channels == c2, (
        f"Expected input to have {c2} channels (got {channels} channels)"
    )
    x = x.astype(jnp.float32)
    B_mat = B_mat.astype(jnp.float32)  # unscaled; 2*pi handled after mod-1 in-kernel

    out_itemsize = jnp.dtype(out_dtype).itemsize
    if tile_b is None:
        # VMEM-budget-driven batch tile: ~4 MiB of output per step so the
        # ~0.35 us per-grid-step overhead amortizes, while double-buffered
        # footprint stays far under every generation's scoped VMEM.
        budget = 4 << 20
        row_bytes = 2 * mapping_size * out_itemsize
        tile_b = max(8, (budget // max(row_bytes, 1)) // 8 * 8)
        if tile_b >= batches:
            # Whole problem fits in one tile: still aim for >= 2 grid steps so
            # v7x's second TensorCore gets work (batch axis is "parallel").
            tile_b = max(8, ((-(-batches // 2)) + 7) // 8 * 8)
    grid = (pl.cdiv(batches, tile_b),)

    # Explicit scoped-VMEM limit derived from the actual double-buffered tiles
    # (x, B, out), with 1.5x slack; floored at the v6e/v7x default of 32 MiB.
    x_bytes = tile_b * channels * 4 * 2
    b_bytes = channels * mapping_size * 4 * 2
    o_bytes = tile_b * 2 * mapping_size * out_itemsize * 2
    vmem_limit = int(
        min(64 << 20, max(32 << 20, (x_bytes + b_bytes + o_bytes) * 3 // 2))
    )

    return pl.pallas_call(
        _fourier_kernel,
        out_shape=jax.ShapeDtypeStruct((batches, 2 * mapping_size), out_dtype),
        grid_spec=pltpu.PrefetchScalarGridSpec(
            num_scalar_prefetch=0,
            grid=grid,
            in_specs=[
                pl.BlockSpec((tile_b, channels), lambda i: (i, 0)),
                # B is small and constant across grid steps: keep it resident.
                pl.BlockSpec((channels, mapping_size), lambda i: (0, 0)),
            ],
            # NOTE(v5e): if a trace shows the output writeback exposed, add
            # pipeline_mode=pl.Buffered(3) here; default 2 buffers suffice on
            # v6e/v7x where HBM is much faster.
            out_specs=pl.BlockSpec((tile_b, 2 * mapping_size), lambda i: (i, 0)),
        ),
        compiler_params=pltpu.CompilerParams(
            dimension_semantics=("parallel",),
            vmem_limit_bytes=vmem_limit,
        ),
    )(x, B_mat)


def fourier_ref(x, B_mat):
    x_proj = jnp.matmul(TWOPI * x, B_mat)
    return jnp.concatenate([jnp.sin(x_proj), jnp.cos(x_proj)], axis=-1)


if __name__ == "__main__":
    key = jax.random.PRNGKey(0)
    kx, kb = jax.random.split(key)

    batches = 8
    num_input_channels = 4
    mapping_size = 128
    scale = 10.0

    # Deterministic parameter init (mirrors torch.randn((C, M)) * scale).
    B_mat = (
        jax.random.normal(kb, (num_input_channels, mapping_size), jnp.float32)
        * scale
    )
    x = jax.random.normal(kx, (batches, num_input_channels), jnp.float32)

    out = fourier_feature_transform(x, B_mat)
    out = jax.block_until_ready(out)

    ref = fourier_ref(x, B_mat)
    assert out.shape == (batches, 2 * mapping_size)
    # Kernel uses exact period-1 reduction + octant polynomials, so it is at
    # least as accurate as the f32 reference; differences come from the
    # reference's own large-argument f32 sin/cos evaluation (~1e-4).
    assert jnp.allclose(out, ref, atol=1e-3, rtol=1e-3), "mismatch vs reference"

    print("KERNEL_OK")
</pallas_src>

<mosaic_0001>
module attributes {stable_mosaic.version = 11 : i64} {
  func.func @_fourier_kernel(%arg0: i32, %arg1: memref<8x4xf32, #tpu.memory_space<vmem>>, %arg2: memref<4x128xf32, #tpu.memory_space<vmem>>, %arg3: memref<8x256xf32, #tpu.memory_space<vmem>>) attributes {dimension_semantics = [#tpu.dimension_semantics<parallel>], iteration_bounds = array<i64: 1>, scalar_prefetch = 0 : i64, scratch_operands = 0 : i64, tpu.core_type = #tpu.core_type<tc>, window_params = [{transform_indices = @transform_0, window_bounds = array<i64: 8, 4>}, {pipeline_mode = #tpu.pipeline_mode<synchronous>, transform_indices = @transform_1, window_bounds = array<i64: 4, 128>}, {transform_indices = @transform_2, window_bounds = array<i64: 8, 256>}]} {
    %c0 = arith.constant 0 : index
    %c0_0 = arith.constant 0 : index
    %0 = vector.load %arg1[%c0, %c0_0] : memref<8x4xf32, #tpu.memory_space<vmem>>, vector<8x4xf32>
    %c0_1 = arith.constant 0 : index
    %c0_2 = arith.constant 0 : index
    %1 = vector.load %arg2[%c0_1, %c0_2] : memref<4x128xf32, #tpu.memory_space<vmem>>, vector<4x128xf32>
    %cst = arith.constant dense<0.000000e+00> : vector<8x128xf32>
    %2 = tpu.matmul %0, %1, %cst {dimension_numbers = #tpu.dot_dimension_numbers<[1], [0], [0], [1], [0, 0, 1, 1], [], []>} : vector<8x4xf32>, vector<4x128xf32>, vector<8x128xf32> -> vector<8x128xf32>
    %3 = math.roundeven %2 : vector<8x128xf32>
    %4 = arith.subf %2, %3 : vector<8x128xf32>
    %cst_3 = arith.constant 4.000000e+00 : f32
    %5 = vector.broadcast %cst_3 : f32 to vector<8x128xf32>
    %6 = arith.mulf %5, %4 : vector<8x128xf32>
    %7 = math.roundeven %6 : vector<8x128xf32>
    %cst_4 = arith.constant 2.500000e-01 : f32
    %8 = vector.broadcast %cst_4 : f32 to vector<8x128xf32>
    %9 = arith.mulf %8, %7 : vector<8x128xf32>
    %10 = arith.subf %4, %9 : vector<8x128xf32>
    %cst_5 = arith.constant 6.28318548 : f32
    %11 = vector.broadcast %cst_5 : f32 to vector<8x128xf32>
    %12 = arith.mulf %11, %10 : vector<8x128xf32>
    %13 = arith.mulf %12, %12 : vector<8x128xf32>
    %cst_6 = arith.constant -1.95152956E-4 : f32
    %14 = vector.broadcast %cst_6 : f32 to vector<8x128xf32>
    %15 = arith.mulf %14, %13 : vector<8x128xf32>
    %cst_7 = arith.constant 0.00833216123 : f32
    %16 = vector.broadcast %cst_7 : f32 to vector<8x128xf32>
    %17 = arith.addf %15, %16 : vector<8x128xf32>
    %18 = arith.mulf %17, %13 : vector<8x128xf32>
    %cst_8 = arith.constant -0.166666552 : f32
    %19 = vector.broadcast %cst_8 : f32 to vector<8x128xf32>
    %20 = arith.addf %18, %19 : vector<8x128xf32>
    %21 = arith.mulf %20, %13 : vector<8x128xf32>
    %22 = arith.mulf %21, %12 : vector<8x128xf32>
    %23 = arith.addf %22, %12 : vector<8x128xf32>
    %cst_9 = arith.constant 2.44331568E-5 : f32
    %24 = vector.broadcast %cst_9 : f32 to vector<8x128xf32>
    %25 = arith.mulf %24, %13 : vector<8x128xf32>
    %cst_10 = arith.constant -0.00138873165 : f32
    %26 = vector.broadcast %cst_10 : f32 to vector<8x128xf32>
    %27 = arith.addf %25, %26 : vector<8x128xf32>
    %28 = arith.mulf %27, %13 : vector<8x128xf32>
    %cst_11 = arith.constant 0.0416666456 : f32
    %29 = vector.broadcast %cst_11 : f32 to vector<8x128xf32>
    %30 = arith.addf %28, %29 : vector<8x128xf32>
    %31 = arith.mulf %30, %13 : vector<8x128xf32>
    %32 = arith.mulf %31, %13 : vector<8x128xf32>
    %cst_12 = arith.constant 5.000000e-01 : f32
    %33 = vector.broadcast %cst_12 : f32 to vector<8x128xf32>
    %34 = arith.mulf %33, %13 : vector<8x128xf32>
    %35 = arith.subf %32, %34 : vector<8x128xf32>
    %cst_13 = arith.constant 1.000000e+00 : f32
    %36 = vector.broadcast %cst_13 : f32 to vector<8x128xf32>
    %37 = arith.addf %35, %36 : vector<8x128xf32>
    %38 = arith.fptosi %7 : vector<8x128xf32> to vector<8x128xi32>
    %c3_i32 = arith.constant 3 : i32
    %39 = vector.broadcast %c3_i32 : i32 to vector<8x128xi32>
    %40 = arith.andi %38, %39 : vector<8x128xi32>
    %c1_i32 = arith.constant 1 : i32
    %41 = vector.broadcast %c1_i32 : i32 to vector<8x128xi32>
    %42 = arith.andi %40, %41 : vector<8x128xi32>
    %c1_i32_14 = arith.constant 1 : i32
    %43 = vector.broadcast %c1_i32_14 : i32 to vector<8x128xi32>
    %44 = arith.cmpi eq, %42, %43 : vector<8x128xi32>
    %45 = arith.select %44, %37, %23 : vector<8x128xi1>, vector<8x128xf32>
    %46 = arith.select %44, %23, %37 : vector<8x128xi1>, vector<8x128xf32>
    %c2_i32 = arith.constant 2 : i32
    %47 = vector.broadcast %c2_i32 : i32 to vector<8x128xi32>
    %48 = arith.cmpi sge, %40, %47 : vector<8x128xi32>
    %cst_15 = arith.constant 0.000000e+00 : f32
    %49 = vector.broadcast %cst_15 : f32 to vector<8x128xf32>
    %50 = arith.subf %49, %45 : vector<8x128xf32>
    %51 = arith.select %48, %50, %45 : vector<8x128xi1>, vector<8x128xf32>
    %c1_i32_16 = arith.constant 1 : i32
    %52 = vector.broadcast %c1_i32_16 : i32 to vector<8x128xi32>
    %53 = arith.cmpi eq, %40, %52 : vector<8x128xi32>
    %c2_i32_17 = arith.constant 2 : i32
    %54 = vector.broadcast %c2_i32_17 : i32 to vector<8x128xi32>
    %55 = arith.cmpi eq, %40, %54 : vector<8x128xi32>
    %56 = arith.ori %53, %55 : vector<8x128xi1>
    %cst_18 = arith.constant 0.000000e+00 : f32
    %57 = vector.broadcast %cst_18 : f32 to vector<8x128xf32>
    %58 = arith.subf %57, %46 : vector<8x128xf32>
    %59 = arith.select %56, %58, %46 : vector<8x128xi1>, vector<8x128xf32>
    %c0_19 = arith.constant 0 : index
    %c0_20 = arith.constant 0 : index
    %60 = vector.load %arg3[%c0_19, %c0_20] : memref<8x256xf32, #tpu.memory_space<vmem>>, vector<8x128xf32>
    tpu.vector_store %arg3[%c0_19, %c0_20], %51 {strides = array<i32>} : memref<8x256xf32, #tpu.memory_space<vmem>>, vector<8x128xf32>,
    %c0_21 = arith.constant 0 : index
    %c128 = arith.constant 128 : index
    %61 = vector.load %arg3[%c0_21, %c128] : memref<8x256xf32, #tpu.memory_space<vmem>>, vector<8x128xf32>
    tpu.vector_store %arg3[%c0_21, %c128], %59 {strides = array<i32>} : memref<8x256xf32, #tpu.memory_space<vmem>>, vector<8x128xf32>,
    return
  }
  func.func @transform_0(%arg0: i32) -> (i32, i32) {
    %c0_i32 = arith.constant 0 : i32
    %c0_i32_0 = arith.constant 0 : i32
    return %arg0, %c0_i32 : i32, i32
  }
  func.func @transform_1(%arg0: i32) -> (i32, i32) {
    %c0_i32 = arith.constant 0 : i32
    %c0_i32_0 = arith.constant 0 : i32
    %c0_i32_1 = arith.constant 0 : i32
    return %c0_i32, %c0_i32_0 : i32, i32
  }
  func.func @transform_2(%arg0: i32) -> (i32, i32) {
    %c0_i32 = arith.constant 0 : i32
    %c0_i32_0 = arith.constant 0 : i32
    return %arg0, %c0_i32 : i32, i32
  }
}

</mosaic_0001>

<llo_original>
// kernel: tpu_custom_call.1
$region0: #{tpu_custom_call.1}
  #allocation0 [shape = 'u32[]', space=smem, size = 0x4, offset = 0x4, fixed_abs, tag = 'smem constant byte address 0x4 - core index']
  #allocation1 [shape = 'u32[144,128]{1,0:T(1,128)}', space=vmem, size = 0x12000, scoped, tag = 'internal scratch']
  %s0 = inlined_call_operand.vmem [shape: f32[8,4], index: 0, kind: input, shape index: {}]
  %s1 = inlined_call_operand.vmem [shape: f32[4,128], index: 1, kind: input, shape index: {}]
  %s2 = inlined_call_operand.hbm [shape: f32[8,256], index: 2, kind: output, shape index: {}]
  %s3 = sld [smem:[#allocation0]]
  $region18: #{tpu_custom_call.1} parent=0
    _
  %s5 = ssub.s32 1, %s3
  %s6 = scalar_select 0, %s5, %s3
  $region1: #{tpu_custom_call.1} parent=0
    #allocation2 [shape = 'u8[8192]{0}', space=vmem, size = 0x2000, scoped, tag = 'output window, operand 0, single buffered']
    #allocation3 [shape = 's32[1]{0}', space=sflag, size = 0x4, scoped, tag = 'scoped memory for tpu_custom_call.1']
    %7 = vsyncpa [#allocation3], 0
    // Predicated region
    $region2: #{tpu_custom_call.1} parent=1 // pred_check
      _
    $region3: #{tpu_custom_call.1} parent=1 // pred_check_branch
      %9 = sbr.rel (0) target = $region5
    $region4: #{tpu_custom_call.1} parent=1 // pred_region
      _
    $region5: #{tpu_custom_call.1} parent=1 // pred_fallthru
      _
    // Predicated region
    $region6: #{tpu_custom_call.1} parent=1 // pred_check
      _
    $region7: #{tpu_custom_call.1} parent=1 // pred_check_branch
      %11 = sbr.rel (0) target = $region9
    $region8: #{tpu_custom_call.1} parent=1 // pred_region
      _
    $region9: #{tpu_custom_call.1} parent=1 // pred_fallthru
      _
    %v12 = vld [vmem:[%s0] sm:$0xff]
    %v13 = vld [vmem:[%s1] sm:$0xf]
    %vm14 = vcmask 31744
    %v16 = vsel %vm14, %v12, 0
    %vm18 = vcmask 1043456
    %v20 = vsel %vm18, %v13, 0
    %22 = vmatprep.subr.mxu0 0.0
    %23 = vmatpush1.msra.mxu0 %v20
    %24 = vmatprep.subr.mxu0 0.0
    %25 = vmatpush1.msra.mxu0 0.0
    %26 = vmatprep.subr.mxu0 0.0
    %27 = vmatpush1.msra.mxu0 0.0
    %28 = vmatprep.subr.mxu0 0.0
    %29 = vmatpush1.msra.mxu0 0.0
    %30 = vmatprep.subr.mxu0 0.0
    %31 = vmatpush1.msra.mxu0 0.0
    %32 = vmatprep.subr.mxu0 0.0
    %33 = vmatpush1.msra.mxu0 0.0
    %34 = vmatprep.subr.mxu0 0.0
    %35 = vmatpush1.msra.mxu0 0.0
    %36 = vmatprep.subr.mxu0 0.0
    %37 = vmatpush1.msra.mxu0 0.0
    %38 = vmatprep.subr.mxu0 0.0
    %39 = vmatpush1.msra.mxu0 0.0
    %40 = vmatprep.subr.mxu0 0.0
    %41 = vmatpush1.msra.mxu0 0.0
    %42 = vmatprep.subr.mxu0 0.0
    %43 = vmatpush1.msra.mxu0 0.0
    %44 = vmatprep.subr.mxu0 0.0
    %45 = vmatpush1.msra.mxu0 0.0
    %46 = vmatprep.subr.mxu0 0.0
    %47 = vmatpush1.msra.mxu0 0.0
    %48 = vmatprep.subr.mxu0 0.0
    %49 = vmatpush1.msra.mxu0 0.0
    %50 = vmatprep.subr.mxu0 0.0
    %51 = vmatpush1.msra.mxu0 0.0
    %52 = vmatprep.subr.mxu0 0.0
    %53 = vmatpush1.msra.mxu0 0.0
    %54 = vmatprep.subr.mxu0 0.0
    %55 = vmatpush1.msra.mxu0 0.0
    %56 = vmatprep.subr.mxu0 0.0
    %57 = vmatpush1.msra.mxu0 0.0
    %58 = vmatprep.subr.mxu0 0.0
    %59 = vmatpush1.msra.mxu0 0.0
    %60 = vmatprep.subr.mxu0 0.0
    %61 = vmatpush1.msra.mxu0 0.0
    %62 = vmatprep.subr.mxu0 0.0
    %63 = vmatpush1.msra.mxu0 0.0
    %64 = vmatprep.subr.mxu0 0.0
    %65 = vmatpush1.msra.mxu0 0.0
    %66 = vmatprep.subr.mxu0 0.0
    %67 = vmatpush1.msra.mxu0 0.0
    %68 = vmatprep.subr.mxu0 0.0
    %69 = vmatpush1.msra.mxu0 0.0
    %70 = vmatprep.subr.mxu0 0.0
    %71 = vmatpush1.msra.mxu0 0.0
    %72 = vmatprep.subr.mxu0 0.0
    %73 = vmatpush1.msra.mxu0 0.0
    %74 = vmatprep.subr.mxu0 0.0
    %75 = vmatpush1.msra.mxu0 0.0
    %76 = vmatprep.subr.mxu0 0.0
    %77 = vmatpush1.msra.mxu0 0.0
    %78 = vmatprep.subr.mxu0 0.0
    %79 = vmatpush1.msra.mxu0 0.0
    %80 = vmatprep.subr.mxu0 0.0
    %81 = vmatpush1.msra.mxu0 0.0
    %82 = vmatprep.subr.mxu0 0.0
    %83 = vmatpush1.msra.mxu0 0.0
    %84 = vmatprep.subr.mxu0 0.0
    %85 = vmatpush1.msra.mxu0 0.0
    %86 = vmatprep.mubr.f32.mxu0 0.0
    %87 = vmatmul.mubr.f32.gmra.mrb[0].mxu0 %v16
    %v88 = vpop.f32.mrb[0].mxu0
    %v89 = vadd.f32 0.0, %v88
    %v90 = vpop.f32.mrb[0].mxu0
    %91 = vdwg.mxu0
    %v92 = vround.ne.pseudo %v89
    %v93 = vsub.f32 %v89, %v92
    %v94 = vmul.f32 %v93, 4.0
    %v95 = vround.ne.pseudo %v94
    %v96 = vmul.f32 %v95, 0.25
    %v97 = vsub.f32 %v93, %v96
    %v98 = vmul.f32 %v97, 6.2831855
    %v99 = vmul.f32 %v98, %v98
    %v100 = vmul.f32 %v99, -0.00019515296
    %v101 = vadd.f32 %v100, 0.008332161
    %v102 = vmul.f32 %v101, %v99
    %v103 = vadd.f32 %v102, -0.16666655
    %v104 = vmul.f32 %v103, %v99
    %v105 = vmul.f32 %v104, %v98
    %v106 = vadd.f32 %v105, %v98
    %v107 = vmul.f32 %v99, 2.4433157e-05
    %v108 = vadd.f32 %v107, -0.0013887316
    %v109 = vmul.f32 %v108, %v99
    %v110 = vadd.f32 %v109, 0.041666646
    %v111 = vmul.f32 %v110, %v99
    %v112 = vmul.f32 %v111, %v99
    %v113 = vmul.f32 %v99, 0.5
    %v114 = vsub.f32 %v112, %v113
    %v115 = vadd.f32 %v114, 1.0
    %v116 = vcvt.f32.s32.ties.to.even %v94
    %v117 = vand.u32 %v116, 3
    %v118 = vand.u32 %v117, 1
    %vm119 = vcmp.eq.s32.totalorder %v118, 1
    %v120 = vsel %vm119, %v115, %v106
    %v121 = vsel %vm119, %v106, %v115
    %vm122 = vcmp.ge.s32.totalorder %v117, 2
    %v123 = vsub.f32 0.0, %v120
    %v124 = vsel %vm122, %v123, %v120
    %vm125 = vcmp.eq.s32.totalorder %v117, 1
    %vm126 = vcmp.eq.s32.totalorder %v117, 2
    %vm127 = vmor %vm125, %vm126
    %v128 = vsub.f32 0.0, %v121
    %v129 = vsel %vm127, %v128, %v121
    %130 = vst [vmem:[#allocation2] sm:$0xff] %v124
    %131 = vst [vmem:[#allocation2 + $0x8] sm:$0xff] %v129
    // Predicated region
    $region10: #{tpu_custom_call.1} parent=1 // pred_check
      _
    $region11: #{tpu_custom_call.1} parent=1 // pred_check_branch
      %133 = sbr.rel (0) target = $region13
    $region12: #{tpu_custom_call.1} parent=1 // pred_region
      %s135 = ssub.s32 256, 256
      %136 = vsyncadd [#allocation3], %s135
      %s138 = sshll.u32 [#allocation2], 4
      %s139 = int_to_ptr.vmem [resolvable:$true] %s138
      %141 = dma.vmem_to_hbm [thread:$0]  %s139, 256, %s2, [#allocation3]
    $region13: #{tpu_custom_call.1} parent=1 // pred_fallthru
      _
    // Predicated region
    $region14: #{tpu_custom_call.1} parent=1 // pred_check
      _
    $region15: #{tpu_custom_call.1} parent=1 // pred_check_branch
      %143 = sbr.rel (0) target = $region17
    $region16: #{tpu_custom_call.1} parent=1 // pred_region
      %144 = dma.done [#allocation3], 256
    $region17: #{tpu_custom_call.1} parent=1 // pred_fallthru
      _
    %145 = vsyncpa [#allocation3], 1

</llo_original>
